<compile_context>
chip_gen: v7x
topology: tpu7x:2x2x1
jax: 0.10.0
libtpu: 0.0.40
codegen_flags: <defaults>
</compile_context>

<pallas_src>
import jax
import jax.numpy as jnp
from jax.experimental import pallas as pl
from jax.experimental.pallas import tpu as pltpu

_LANES = 128          # vreg lane width (same on v5e/v6e/v7x)
_SUBLANES = 8         # f32 sublanes per vreg
_TILE_ROWS = 512      # per-step tile rows for the gridded path (~85% HBM BW)


def _identity_kernel(x_ref, o_ref):
    # Trivial pass-through on the VPU; tiles are lane-dense (rows, 128).
    o_ref[...] = x_ref[...]


def pallas_identity(x: jax.Array) -> jax.Array:
    """Standalone Pallas smoke test: lane-dense identity copy.

    NOT called from EventEncoder.forward (the module hot path is a no-op);
    exists only to validate the Pallas plumbing on TPU.  Handles arbitrary
    sizes by padding the flat vector to a multiple of 8x128 elements.
    """
    orig_shape = x.shape
    orig_dtype = x.dtype
    n = x.size

    # Pad flat vector to a multiple of (8 sublanes x 128 lanes) and reshape
    # to a lane-dense (rows, 128) slab -> unmasked full-lane loads/stores.
    flat = x.reshape(-1)
    chunk = _SUBLANES * _LANES
    n_pad = ((n + chunk - 1) // chunk) * chunk
    if n_pad != n:
        flat = jnp.pad(flat, (0, n_pad - n))
    rows = n_pad // _LANES
    slab = flat.reshape(rows, _LANES)

    if rows >= 2 * _TILE_ROWS:
        # Large slab: 1-D grid, (512, 128) tiles, default double-buffering.
        rows_pad = ((rows + _TILE_ROWS - 1) // _TILE_ROWS) * _TILE_ROWS
        if rows_pad != rows:
            slab = jnp.pad(slab, ((0, rows_pad - rows), (0, 0)))
        out = pl.pallas_call(
            _identity_kernel,
            out_shape=jax.ShapeDtypeStruct((rows_pad, _LANES), slab.dtype),
            grid=(rows_pad // _TILE_ROWS,),
            in_specs=[pl.BlockSpec((_TILE_ROWS, _LANES), lambda i: (i, 0))],
            out_specs=pl.BlockSpec((_TILE_ROWS, _LANES), lambda i: (i, 0)),
            compiler_params=pltpu.CompilerParams(
                dimension_semantics=("parallel",)),
        )(slab)
        out = out[:rows]
    else:
        # Small slab (the smoke-test case): single full-array block; kernel is
        # 100% launch-overhead/DMA-bound, so nothing in the body matters.
        out = pl.pallas_call(
            _identity_kernel,
            out_shape=jax.ShapeDtypeStruct(slab.shape, slab.dtype),
            in_specs=[pl.BlockSpec(memory_space=pltpu.VMEM)],
            out_specs=pl.BlockSpec(memory_space=pltpu.VMEM),
        )(slab)

    return out.reshape(-1)[:n].reshape(orig_shape).astype(orig_dtype)


class EventEncoder:
    """JAX/Pallas port of the reference EventEncoder.

    The reference __init__ only stores `args` and `args.pred_dim`; it creates
    no parameters.  The reference forward() returns None and does no compute,
    so forward() here launches NO kernel and forces NO host sync.
    """

    def __init__(self, args):
        self.args = args
        self.pred_dim = args.pred_dim
        # TODO(synk): reference __init__ imports TransformerEncoder(Layer) but
        # never instantiates them and forward() is a no-op, so there are no
        # weights and no transformer compute to port.  If real encoder layers
        # are added later, generation-aware tiling guidance:
        #   * Common: feature dim last (multiple of 128 lanes), f32 VMEM
        #     accumulator scratch, reduction (K) as the LAST grid axis marked
        #     "arbitrary", independent axes "parallel".
        #   * v6e / v7x: MXU is 2x256x256 — pick K/N tiles as multiples of 256
        #     (e.g. tk=512, tn=256/512); 128-wide tiles leave half the
        #     systolic array idle per push.
        #   * v7x: only 64 MiB physical VMEM (~32 MiB scoped default) and
        #     2 TensorCores/chip — budget resident bytes ~= 2*(A_tile+B_tile)
        #     + f32 acc + out tile, raise vmem_limit_bytes explicitly but keep
        #     >=25% headroom; mark independent grid axes "parallel" so Mosaic
        #     shards across both TCs; MXU has fp8 but NO int8/int4, so any
        #     int8-weight path from v5e/v6e needs an fp8 or bf16 fallback.
        #   * v5e: 4x128^2 MXU — keep 128-multiple tiles (256 only adds VMEM
        #     pressure), keep accumulators AND elementwise epilogues in f32
        #     (no bf16 VPU/EUP), and expect softmax/gelu to go VPU/EUP-bound
        #     sooner given ~4.6x less MXU throughput than v6e.

    def forward(self, x):
        # Matches PyTorch exactly: no computation, returns None.
        # (No Pallas call, no block_until_ready — zero device work.)
        return None

    __call__ = forward


class _Args:
    pred_dim = 32


if __name__ == "__main__":
    key = jax.random.PRNGKey(0)

    # Small NCHW input consistent with an event-frame style encoder input.
    x = jax.random.normal(key, (2, 4, 16, 16), dtype=jnp.float32)  # 2048 elems

    # Smoke test 1: lane-dense identity copy (no aliasing, x stays readable).
    y = jax.block_until_ready(pallas_identity(x))
    assert y.shape == x.shape and y.dtype == x.dtype
    assert bool(jnp.allclose(y, x))

    # Smoke test 2: odd size exercises the pad-to-lane-dense fallback path.
    x_odd = jax.random.normal(jax.random.PRNGKey(1), (2, 3, 5, 7),
                              dtype=jnp.float32)  # 210 elems -> padded to 1024
    y_odd = jax.block_until_ready(pallas_identity(x_odd))
    assert y_odd.shape == x_odd.shape and y_odd.dtype == x_odd.dtype
    assert bool(jnp.allclose(y_odd, x_odd))

    # Module-level call: by reference semantics this is a pure no-op.
    model = EventEncoder(_Args())
    out = model(x)
    assert out is None  # matches PyTorch: forward returns None

    print("KERNEL_OK")
</pallas_src>

<mosaic_0001>
module attributes {stable_mosaic.version = 11 : i64} {
  func.func @_identity_kernel(%arg0: memref<16x128xf32, #tpu.memory_space<vmem>>, %arg1: memref<16x128xf32, #tpu.memory_space<vmem>>) attributes {dimension_semantics = [], scalar_prefetch = 0 : i64, scratch_operands = 0 : i64, tpu.core_type = #tpu.core_type<tc>} {
    %c0 = arith.constant 0 : index
    %c0_0 = arith.constant 0 : index
    %0 = vector.load %arg0[%c0, %c0_0] : memref<16x128xf32, #tpu.memory_space<vmem>>, vector<16x128xf32>
    %c0_1 = arith.constant 0 : index
    %c0_2 = arith.constant 0 : index
    %1 = vector.load %arg1[%c0_1, %c0_2] : memref<16x128xf32, #tpu.memory_space<vmem>>, vector<16x128xf32>
    tpu.vector_store %arg1[%c0_1, %c0_2], %0 {strides = array<i32>} : memref<16x128xf32, #tpu.memory_space<vmem>>, vector<16x128xf32>,
    return
  }
}

</mosaic_0001>

<llo_original>
// kernel: tpu_custom_call.1
$region0: #{tpu_custom_call.1}
  #allocation0 [shape = 'u32[]', space=smem, size = 0x4, offset = 0x4, fixed_abs, tag = 'smem constant byte address 0x4 - core index']
  #allocation1 [shape = 'u32[144,128]{1,0:T(1,128)}', space=vmem, size = 0x12000, scoped, tag = 'internal scratch']
  %s0 = inlined_call_operand.hbm [shape: f32[16,128], index: 0, kind: input, shape index: {}]
  %s1 = inlined_call_operand.hbm [shape: f32[16,128], index: 1, kind: output, shape index: {}]
  %s2 = sld [smem:[#allocation0]]
  $region18: #{tpu_custom_call.1} parent=0
    _
  %s4 = ssub.s32 1, %s2
  %s5 = scalar_select 0, %s4, %s2
  $region1: #{tpu_custom_call.1} parent=0
    #allocation2 [shape = 'u8[8192]{0}', space=vmem, size = 0x2000, scoped, tag = 'input window, operand 0, single buffered']
    #allocation3 [shape = 's32[1]{0}', space=sflag, size = 0x4, scoped, tag = 'scoped memory for tpu_custom_call.1']
    #allocation4 [shape = 's32[1]{0}', space=sflag, size = 0x4, scoped, tag = 'scoped memory for tpu_custom_call.1']
    #allocation5 [shape = 'u8[8192]{0}', space=vmem, size = 0x2000, scoped, tag = 'output window, operand 0, single buffered']
    %6 = vsyncpa [#allocation3], 0
    %7 = vsyncpa [#allocation4], 0
    // Predicated region
    $region2: #{tpu_custom_call.1} parent=1 // pred_check
      _
    $region3: #{tpu_custom_call.1} parent=1 // pred_check_branch
      %9 = sbr.rel (0) target = $region5
    $region4: #{tpu_custom_call.1} parent=1 // pred_region
      %s11 = ssub.s32 256, 256
      %12 = vsyncadd [#allocation3], %s11
      %s13 = sshll.u32 [#allocation2], 4
      %s14 = int_to_ptr.vmem [resolvable:$true] %s13
      %19 = dma.hbm_to_vmem [thread:$0]  %s0, 256, %s14, [#allocation3], 128, 128, 8
    $region5: #{tpu_custom_call.1} parent=1 // pred_fallthru
      _
    // Predicated region
    $region6: #{tpu_custom_call.1} parent=1 // pred_check
      _
    $region7: #{tpu_custom_call.1} parent=1 // pred_check_branch
      %21 = sbr.rel (0) target = $region9
    $region8: #{tpu_custom_call.1} parent=1 // pred_region
      %22 = dma.done [#allocation3], 256
    $region9: #{tpu_custom_call.1} parent=1 // pred_fallthru
      _
    %v23 = vld [vmem:[#allocation2] sm:$0xff]
    %v24 = vld [vmem:[#allocation2 + $0x8] sm:$0xff]
    %25 = vst [vmem:[#allocation5] sm:$0xff] %v23
    %26 = vst [vmem:[#allocation5 + $0x8] sm:$0xff] %v24
    // Predicated region
    $region10: #{tpu_custom_call.1} parent=1 // pred_check
      _
    $region11: #{tpu_custom_call.1} parent=1 // pred_check_branch
      %28 = sbr.rel (0) target = $region13
    $region12: #{tpu_custom_call.1} parent=1 // pred_region
      %s30 = ssub.s32 256, 256
      %31 = vsyncadd [#allocation4], %s30
      %s32 = sshll.u32 [#allocation5], 4
      %s33 = int_to_ptr.vmem [resolvable:$true] %s32
      %38 = dma.vmem_to_hbm [thread:$0]  %s33, 256, %s1, [#allocation4], 128, 128, 8
    $region13: #{tpu_custom_call.1} parent=1 // pred_fallthru
      _
    // Predicated region
    $region14: #{tpu_custom_call.1} parent=1 // pred_check
      _
    $region15: #{tpu_custom_call.1} parent=1 // pred_check_branch
      %40 = sbr.rel (0) target = $region17
    $region16: #{tpu_custom_call.1} parent=1 // pred_region
      %41 = dma.done [#allocation4], 256
    $region17: #{tpu_custom_call.1} parent=1 // pred_fallthru
      _
    %42 = vsyncpa [#allocation3], 1
    %43 = vsyncpa [#allocation4], 1

</llo_original>
